<compile_context>
chip_gen: v6e
topology: v6e:2x2x1
jax: 0.10.0
libtpu: 0.0.40
codegen_flags: <defaults>
</compile_context>

<pallas_src>
import math

import jax
import jax.numpy as jnp
from jax.experimental import pallas as pl
from jax.experimental.pallas import tpu as pltpu


INTERMEDIATE = 768  # fixed by the module definition
_INV_SQRT2 = 1.0 / math.sqrt(2.0)


def _round_up(x, m):
    return ((x + m - 1) // m) * m


def _fused_head_kernel(x_ref, w1_ref, b1_ref, w2_ref, b2_ref, o_ref, g_ref):
    # Grid: (i over row tiles, j over vocab tiles).
    # x_ref: (tm, H)      W1: (H, 768)    b1: (1, 768)   [f32]
    # W2: (768, tn)       b2: (1, tn)     [f32]          o_ref: (tm, tn)
    # g_ref: VMEM scratch (tm, 768), persists across the j (vocab) axis.

    # First GEMM + GELU only once per row tile, cached in scratch and reused
    # for every vocab tile of the second GEMM.
    @pl.when(pl.program_id(1) == 0)
    def _():
        h = jnp.dot(x_ref[...], w1_ref[...],
                    preferred_element_type=jnp.float32) + b1_ref[...]
        # exact erf GELU == torch.nn.GELU() default
        g = 0.5 * h * (1.0 + jax.lax.erf(h * _INV_SQRT2))
        g_ref[...] = g.astype(g_ref.dtype)

    # dropout(p=0.1) is identity in eval mode.
    # TODO(synk): training-mode stochastic dropout intentionally omitted.

    out = jnp.dot(g_ref[...], w2_ref[...],
                  preferred_element_type=jnp.float32) + b2_ref[...]
    o_ref[...] = out.astype(o_ref.dtype)


def llama_generation_head(t, w1, b1, w2, b2, *, tm=None, tn=None, out_dtype=None):
    """Fused projection -> GELU -> (dropout=id) -> vocab head.

    t:  (B, S, H)            any float dtype (bf16 recommended for prod)
    w1: (H, 768)   b1: (768,)
    w2: (768, V)   b2: (V,)
    Returns (B, S, V) in `out_dtype` (defaults to t.dtype).
    """
    B, S, H = t.shape
    assert w1.shape == (H, INTERMEDIATE)
    V = w2.shape[1]
    assert w2.shape == (INTERMEDIATE, V)
    out_dtype = out_dtype if out_dtype is not None else t.dtype

    M = B * S
    # MXU-height row tile; lane-dense vocab tile so W2 streams from HBM and
    # the output store is wide/unmasked.  Small shapes get single full tiles.
    if tm is None:
        tm = min(256, _round_up(M, 8))
    if tn is None:
        tn = min(2048, _round_up(V, 128))

    M_pad = _round_up(M, tm)
    V_pad = _round_up(V, tn)

    x2d = t.reshape(M, H)
    if M_pad != M:
        x2d = jnp.pad(x2d, ((0, M_pad - M), (0, 0)))
    w2p = w2 if V_pad == V else jnp.pad(w2, ((0, 0), (0, V_pad - V)))
    b2p = b2 if V_pad == V else jnp.pad(b2, ((0, V_pad - V),))

    # Biases applied in f32 on top of the f32 MXU accumulator.
    b1_2d = b1.astype(jnp.float32).reshape(1, INTERMEDIATE)
    b2_2d = b2p.astype(jnp.float32).reshape(1, V_pad)

    n_i = M_pad // tm
    n_j = V_pad // tn

    flops = 2 * M * (H * INTERMEDIATE + INTERMEDIATE * V)
    bytes_accessed = (
        x2d.size * x2d.dtype.itemsize
        + w1.size * w1.dtype.itemsize
        + w2p.size * w2p.dtype.itemsize
        + b1_2d.size * 4 + b2_2d.size * 4
        + M_pad * V_pad * jnp.dtype(out_dtype).itemsize
    )

    out2d = pl.pallas_call(
        _fused_head_kernel,
        out_shape=jax.ShapeDtypeStruct((M_pad, V_pad), out_dtype),
        grid_spec=pltpu.PrefetchScalarGridSpec(
            num_scalar_prefetch=0,
            grid=(n_i, n_j),
            in_specs=[
                pl.BlockSpec((tm, H), lambda i, j: (i, 0)),
                pl.BlockSpec((H, INTERMEDIATE), lambda i, j: (0, 0)),
                pl.BlockSpec((1, INTERMEDIATE), lambda i, j: (0, 0)),
                pl.BlockSpec((INTERMEDIATE, tn), lambda i, j: (0, j)),
                pl.BlockSpec((1, tn), lambda i, j: (0, j)),
            ],
            out_specs=pl.BlockSpec((tm, tn), lambda i, j: (i, j)),
            # Intermediate activations cached in the second-GEMM operand dtype.
            scratch_shapes=[pltpu.VMEM((tm, INTERMEDIATE), w2.dtype)],
        ),
        compiler_params=pltpu.CompilerParams(
            dimension_semantics=("parallel", "arbitrary"),
            vmem_limit_bytes=48 * 1024 * 1024,  # fits v7x 64 MiB physical
        ),
        cost_estimate=pl.CostEstimate(
            flops=flops,
            transcendentals=M * INTERMEDIATE,
            bytes_accessed=bytes_accessed,
        ),
    )(x2d, w1, b1_2d, w2p, b2_2d)

    return out2d[:M, :V].reshape(B, S, V)


def _reference(t, w1, b1, w2, b2):
    h = jnp.einsum("bsh,hd->bsd", t.astype(jnp.float32),
                   w1.astype(jnp.float32)) + b1.astype(jnp.float32)
    g = 0.5 * h * (1.0 + jax.lax.erf(h / jnp.sqrt(2.0)))
    return jnp.einsum("bsd,dv->bsv", g,
                      w2.astype(jnp.float32)) + b2.astype(jnp.float32)


if __name__ == "__main__":
    # Small config: batch=2, seq=8, hidden_size=32, vocab_size=256.
    B, S, H, V = 2, 8, 32, 256

    key = jax.random.PRNGKey(0)
    k_t, k_w1, k_b1, k_w2, k_b2 = jax.random.split(key, 5)

    # Deterministic parameter init mimicking nn.Linear's uniform(-1/sqrt(fan_in), 1/sqrt(fan_in)).
    lim1 = 1.0 / math.sqrt(H)
    lim2 = 1.0 / math.sqrt(INTERMEDIATE)
    w1 = jax.random.uniform(k_w1, (H, INTERMEDIATE), jnp.float32, -lim1, lim1)
    b1 = jax.random.uniform(k_b1, (INTERMEDIATE,), jnp.float32, -lim1, lim1)
    w2 = jax.random.uniform(k_w2, (INTERMEDIATE, V), jnp.float32, -lim2, lim2)
    b2 = jax.random.uniform(k_b2, (V,), jnp.float32, -lim2, lim2)

    t = jax.random.normal(k_t, (B, S, H), jnp.float32)

    # 1) f32 path, exact comparison against pure-JAX reference.
    out = jax.block_until_ready(llama_generation_head(t, w1, b1, w2, b2))
    ref = _reference(t, w1, b1, w2, b2)
    assert out.shape == (B, S, V)
    assert jnp.allclose(out, ref, atol=2e-4, rtol=2e-4), "f32 mismatch vs reference"

    # 2) ragged shapes (M, V not tile multiples) exercise the pad + slice path.
    t_r = t[:1, :5]                      # M = 5
    w2_r, b2_r = w2[:, :200], b2[:200]   # V = 200
    out_r = jax.block_until_ready(llama_generation_head(t_r, w1, b1, w2_r, b2_r))
    ref_r = _reference(t_r, w1, b1, w2_r, b2_r)
    assert out_r.shape == (1, 5, 200)
    assert jnp.allclose(out_r, ref_r, atol=2e-4, rtol=2e-4), "ragged mismatch"

    # 3) bf16 weights/activations (production mode: half the HBM traffic on
    #    the W2 stream), f32 accumulation inside the kernel.
    t_bf = t.astype(jnp.bfloat16)
    w1_bf = w1.astype(jnp.bfloat16)
    w2_bf = w2.astype(jnp.bfloat16)
    out_bf = jax.block_until_ready(
        llama_generation_head(t_bf, w1_bf, b1, w2_bf, b2, out_dtype=jnp.float32))
    ref_bf = _reference(t_bf, w1_bf, b1, w2_bf, b2)
    assert jnp.allclose(out_bf, ref_bf, atol=5e-2, rtol=5e-2), "bf16 mismatch"

    print("KERNEL_OK")
</pallas_src>

<mosaic_0001>
module attributes {stable_mosaic.version = 11 : i64} {
  func.func @_fused_head_kernel(%arg0: i32, %arg1: i32, %arg2: memref<16x32xf32, #tpu.memory_space<vmem>>, %arg3: memref<32x768xf32, #tpu.memory_space<vmem>>, %arg4: memref<1x768xf32, #tpu.memory_space<vmem>>, %arg5: memref<768x256xf32, #tpu.memory_space<vmem>>, %arg6: memref<1x256xf32, #tpu.memory_space<vmem>>, %arg7: memref<16x256xf32, #tpu.memory_space<vmem>>, %arg8: memref<16x768xf32, #tpu.memory_space<vmem>>) attributes {dimension_semantics = [#tpu.dimension_semantics<parallel>, #tpu.dimension_semantics<arbitrary>], iteration_bounds = array<i64: 1, 1>, scalar_prefetch = 0 : i64, scratch_operands = 1 : i64, tpu.core_type = #tpu.core_type<tc>, window_params = [{transform_indices = @transform_0, window_bounds = array<i64: 16, 32>}, {pipeline_mode = #tpu.pipeline_mode<synchronous>, transform_indices = @transform_1, window_bounds = array<i64: 32, 768>}, {pipeline_mode = #tpu.pipeline_mode<synchronous>, transform_indices = @transform_2, window_bounds = array<i64: 1, 768>}, {transform_indices = @transform_3, window_bounds = array<i64: 768, 256>}, {transform_indices = @transform_4, window_bounds = array<i64: 1, 256>}, {transform_indices = @transform_5, window_bounds = array<i64: 16, 256>}]} {
    %c0_i32 = arith.constant 0 : i32
    %0 = arith.cmpi eq, %arg1, %c0_i32 : i32
    %1 = arith.extui %0 : i1 to i32
    %c0_i32_0 = arith.constant 0 : i32
    %2 = arith.cmpi ne, %1, %c0_i32_0 : i32
    scf.if %2 {
      %c0_8 = arith.constant 0 : index
      %c0_9 = arith.constant 0 : index
      %10 = vector.load %arg2[%c0_8, %c0_9] : memref<16x32xf32, #tpu.memory_space<vmem>>, vector<16x32xf32>
      %c0_10 = arith.constant 0 : index
      %c0_11 = arith.constant 0 : index
      %11 = vector.load %arg3[%c0_10, %c0_11] : memref<32x768xf32, #tpu.memory_space<vmem>>, vector<32x768xf32>
      %cst_12 = arith.constant dense<0.000000e+00> : vector<16x768xf32>
      %12 = tpu.matmul %10, %11, %cst_12 {dimension_numbers = #tpu.dot_dimension_numbers<[1], [0], [0], [1], [0, 0, 1, 1], [], []>} : vector<16x32xf32>, vector<32x768xf32>, vector<16x768xf32> -> vector<16x768xf32>
      %c0_13 = arith.constant 0 : index
      %c0_14 = arith.constant 0 : index
      %13 = vector.load %arg4[%c0_13, %c0_14] : memref<1x768xf32, #tpu.memory_space<vmem>>, vector<1x768xf32>
      %14 = vector.broadcast %13 : vector<1x768xf32> to vector<16x768xf32>
      %15 = arith.addf %12, %14 : vector<16x768xf32>
      %cst_15 = arith.constant 5.000000e-01 : f32
      %16 = vector.broadcast %cst_15 : f32 to vector<16x768xf32>
      %17 = arith.mulf %16, %15 : vector<16x768xf32>
      %cst_16 = arith.constant 0.707106769 : f32
      %18 = vector.broadcast %cst_16 : f32 to vector<16x768xf32>
      %19 = arith.mulf %15, %18 : vector<16x768xf32>
      %20 = math.erf %19 : vector<16x768xf32>
      %cst_17 = arith.constant 1.000000e+00 : f32
      %21 = vector.broadcast %cst_17 : f32 to vector<16x768xf32>
      %22 = arith.addf %21, %20 : vector<16x768xf32>
      %23 = arith.mulf %17, %22 : vector<16x768xf32>
      %c0_18 = arith.constant 0 : index
      %c0_19 = arith.constant 0 : index
      %24 = vector.load %arg8[%c0_18, %c0_19] : memref<16x768xf32, #tpu.memory_space<vmem>>, vector<16x768xf32>
      tpu.vector_store %arg8[%c0_18, %c0_19], %23 {strides = array<i32>} : memref<16x768xf32, #tpu.memory_space<vmem>>, vector<16x768xf32>,
    } else {
    }
    %c0 = arith.constant 0 : index
    %c0_1 = arith.constant 0 : index
    %3 = vector.load %arg8[%c0, %c0_1] : memref<16x768xf32, #tpu.memory_space<vmem>>, vector<16x768xf32>
    %c0_2 = arith.constant 0 : index
    %c0_3 = arith.constant 0 : index
    %4 = vector.load %arg5[%c0_2, %c0_3] : memref<768x256xf32, #tpu.memory_space<vmem>>, vector<768x256xf32>
    %cst = arith.constant dense<0.000000e+00> : vector<16x256xf32>
    %5 = tpu.matmul %3, %4, %cst {dimension_numbers = #tpu.dot_dimension_numbers<[1], [0], [0], [1], [0, 0, 1, 1], [], []>} : vector<16x768xf32>, vector<768x256xf32>, vector<16x256xf32> -> vector<16x256xf32>
    %c0_4 = arith.constant 0 : index
    %c0_5 = arith.constant 0 : index
    %6 = vector.load %arg6[%c0_4, %c0_5] : memref<1x256xf32, #tpu.memory_space<vmem>>, vector<1x256xf32>
    %7 = vector.broadcast %6 : vector<1x256xf32> to vector<16x256xf32>
    %8 = arith.addf %5, %7 : vector<16x256xf32>
    %c0_6 = arith.constant 0 : index
    %c0_7 = arith.constant 0 : index
    %9 = vector.load %arg7[%c0_6, %c0_7] : memref<16x256xf32, #tpu.memory_space<vmem>>, vector<16x256xf32>
    tpu.vector_store %arg7[%c0_6, %c0_7], %8 {strides = array<i32>} : memref<16x256xf32, #tpu.memory_space<vmem>>, vector<16x256xf32>,
    return
  }
  func.func @transform_0(%arg0: i32, %arg1: i32) -> (i32, i32) {
    %c0_i32 = arith.constant 0 : i32
    %c0_i32_0 = arith.constant 0 : i32
    return %arg0, %c0_i32 : i32, i32
  }
  func.func @transform_1(%arg0: i32, %arg1: i32) -> (i32, i32) {
    %c0_i32 = arith.constant 0 : i32
    %c0_i32_0 = arith.constant 0 : i32
    %c0_i32_1 = arith.constant 0 : i32
    return %c0_i32, %c0_i32_0 : i32, i32
  }
  func.func @transform_2(%arg0: i32, %arg1: i32) -> (i32, i32) {
    %c0_i32 = arith.constant 0 : i32
    %c0_i32_0 = arith.constant 0 : i32
    %c0_i32_1 = arith.constant 0 : i32
    return %c0_i32, %c0_i32_0 : i32, i32
  }
  func.func @transform_3(%arg0: i32, %arg1: i32) -> (i32, i32) {
    %c0_i32 = arith.constant 0 : i32
    %c0_i32_0 = arith.constant 0 : i32
    return %c0_i32, %arg1 : i32, i32
  }
  func.func @transform_4(%arg0: i32, %arg1: i32) -> (i32, i32) {
    %c0_i32 = arith.constant 0 : i32
    %c0_i32_0 = arith.constant 0 : i32
    return %c0_i32, %arg1 : i32, i32
  }
  func.func @transform_5(%arg0: i32, %arg1: i32) -> (i32, i32) {
    %c0_i32 = arith.constant 0 : i32
    return %arg0, %arg1 : i32, i32
  }
}

</mosaic_0001>

<llo_original>
// kernel: tpu_custom_call.1
$region0: #{tpu_custom_call.1}
  #allocation0 [shape = 'u32[]', space=smem, size = 0x4, offset = 0x4, fixed_abs, tag = 'smem constant byte address 0x4 - core index']
  #allocation1 [shape = 'u32[144,128]{1,0:T(1,128)}', space=vmem, size = 0x12000, scoped, tag = 'internal scratch']
  #allocation2 [shape = 'f32[16,768]{1,0:T(8,128)}', space=vmem, size = 0xc000, scoped, tag = 'scratch operand']
  %s0 = inlined_call_operand.hbm [shape: f32[16,32], index: 0, kind: input, shape index: {}]
  %s1 = inlined_call_operand.hbm [shape: f32[32,768], index: 1, kind: input, shape index: {}]
  %s2 = inlined_call_operand.hbm [shape: f32[1,768], index: 2, kind: input, shape index: {}]
  %s3 = inlined_call_operand.hbm [shape: f32[768,256], index: 3, kind: input, shape index: {}]
  %s4 = inlined_call_operand.vmem [shape: f32[1,256], index: 4, kind: input, shape index: {}]
  %s5 = inlined_call_operand.hbm [shape: f32[16,256], index: 5, kind: output, shape index: {}]
  %s6 = sld [smem:[#allocation0]]
  $region50: #{tpu_custom_call.1} parent=0
    _
  %s8 = ssub.s32 1, %s6
  %s9 = scalar_select 0, %s8, %s6
  $region1: #{tpu_custom_call.1} parent=0
    #allocation3 [shape = 'u8[8192]{0}', space=vmem, size = 0x2000, scoped, tag = 'input window, operand 0, single buffered']
    #allocation4 [shape = 's32[1]{0}', space=sflag, size = 0x4, scoped, tag = 'scoped memory for tpu_custom_call.1']
    #allocation5 [shape = 's32[1]{0}', space=sflag, size = 0x4, scoped, tag = 'scoped memory for tpu_custom_call.1']
    #allocation6 [shape = 'u8[98304]{0}', space=vmem, size = 0x18000, scoped, tag = 'input window, operand 1, single buffered']
    #allocation7 [shape = 's32[1]{0}', space=sflag, size = 0x4, scoped, tag = 'scoped memory for tpu_custom_call.1']
    #allocation8 [shape = 'u8[3072]{0}', space=vmem, size = 0xc00, scoped, tag = 'input window, operand 2, single buffered']
    #allocation9 [shape = 'u8[786432]{0}', space=vmem, size = 0xc0000, scoped, tag = 'input window, operand 3, single buffered']
    #allocation10 [shape = 's32[1]{0}', space=sflag, size = 0x4, scoped, tag = 'scoped memory for tpu_custom_call.1']
    #allocation11 [shape = 'u8[16384]{0}', space=vmem, size = 0x4000, scoped, tag = 'output window, operand 0, single buffered']
    %10 = vsyncpa [#allocation4], 0
    %11 = vsyncpa [#allocation7], 0
    %12 = vsyncpa [#allocation10], 0
    %13 = vsyncpa [#allocation5], 0
    // Predicated region
    $region2: #{tpu_custom_call.1} parent=1 // pred_check
      _
    $region3: #{tpu_custom_call.1} parent=1 // pred_check_branch
      %15 = sbr.rel (0) target = $region5
    $region4: #{tpu_custom_call.1} parent=1 // pred_region
      %s17 = ssub.s32 256, 256
      %18 = vsyncadd [#allocation4], %s17
      %s19 = sshll.u32 [#allocation3], 4
      %s20 = int_to_ptr.vmem [resolvable:$true] %s19
      %25 = dma.hbm_to_vmem [thread:$0]  %s0, 256, %s20, [#allocation4], 128, 128, 8
    $region5: #{tpu_custom_call.1} parent=1 // pred_fallthru
      _
    // Predicated region
    $region6: #{tpu_custom_call.1} parent=1 // pred_check
      _
    $region7: #{tpu_custom_call.1} parent=1 // pred_check_branch
      %27 = sbr.rel (0) target = $region9
    $region8: #{tpu_custom_call.1} parent=1 // pred_region
      %s29 = ssub.s32 3072, 3072
      %30 = vsyncadd [#allocation7], %s29
      %s31 = sshll.u32 [#allocation6], 4
      %s32 = int_to_ptr.vmem [resolvable:$true] %s31
      %37 = dma.hbm_to_vmem [thread:$0]  %s1, 3072, %s32, [#allocation7], 768, 768, 48
    $region9: #{tpu_custom_call.1} parent=1 // pred_fallthru
      _
    // Predicated region
    $region10: #{tpu_custom_call.1} parent=1 // pred_check
      _
    $region11: #{tpu_custom_call.1} parent=1 // pred_check_branch
      %39 = sbr.rel (0) target = $region13
    $region12: #{tpu_custom_call.1} parent=1 // pred_region
      %s41 = ssub.s32 96, 96
      %42 = vsyncadd [#allocation7], %s41
      %s44 = sshll.u32 [#allocation8], 4
      %s45 = int_to_ptr.vmem [resolvable:$true] %s44
      %47 = dma.hbm_to_vmem [thread:$0]  %s2, 96, %s45, [#allocation7]
    $region13: #{tpu_custom_call.1} parent=1 // pred_fallthru
      _
    // Predicated region
    $region14: #{tpu_custom_call.1} parent=1 // pred_check
      _
    $region15: #{tpu_custom_call.1} parent=1 // pred_check_branch
      %49 = sbr.rel (0) target = $region17
    $region16: #{tpu_custom_call.1} parent=1 // pred_region
      %s51 = ssub.s32 24576, 24576
      %52 = vsyncadd [#allocation10], %s51
      %s53 = sshll.u32 [#allocation9], 4
      %s54 = int_to_ptr.vmem [resolvable:$true] %s53
      %59 = dma.hbm_to_vmem [thread:$0]  %s3, 24576, %s54, [#allocation10], 256, 256, 16
    $region17: #{tpu_custom_call.1} parent=1 // pred_fallthru
      _
    // Predicated region
    $region18: #{tpu_custom_call.1} parent=1 // pred_check
      _
    $region19: #{tpu_custom_call.1} parent=1 // pred_check_branch
      %61 = sbr.rel (0) target = $region21
    $region20: #{tpu_custom_call.1} parent=1 // pred_region
      _
    $region21: #{tpu_custom_call.1} parent=1 // pred_fallthru
      _
    // Predicated region
    $region22: #{tpu_custom_call.1} parent=1 // pred_check
      _
    $region23: #{tpu_custom_call.1} parent=1 // pred_check_branch
      %63 = sbr.rel (0) target = $region25
    $region24: #{tpu_custom_call.1} parent=1 // pred_region
      %64 = dma.done [#allocation4], 256
    $region25: #{tpu_custom_call.1} parent=1 // pred_fallthru
      _
    // Predicated region
    $region26: #{tpu_custom_call.1} parent=1 // pred_check
      _
    $region27: #{tpu_custom_call.1} parent=1 // pred_check_branch
      %66 = sbr.rel (0) target = $region29
    $region28: #{tpu_custom_call.1} parent=1 // pred_region
      %67 = dma.done [#allocation7], 3072
    $region29: #{tpu_custom_call.1} parent=1 // pred_fallthru
      _
    // Predicated region
    $region30: #{tpu_custom_call.1} parent=1 // pred_check
      _
    $region31: #{tpu_custom_call.1} parent=1 // pred_check_branch
      %69 = sbr.rel (0) target = $region33
    $region32: #{tpu_custom_call.1} parent=1 // pred_region
      %70 = dma.done [#allocation7], 96
    $region33: #{tpu_custom_call.1} parent=1 // pred_fallthru
      _
    // Predicated region
    $region34: #{tpu_custom_call.1} parent=1 // pred_check
      _
    $region35: #{tpu_custom_call.1} parent=1 // pred_check_branch
      %72 = sbr.rel (0) target = $region37
    $region36: #{tpu_custom_call.1} parent=1 // pred_region
      %73 = dma.done [#allocation10], 24576
    $region37: #{tpu_custom_call.1} parent=1 // pred_fallthru
      _
    %p74 = scmp.eq.s32.totalorder 0, 0
    // Predicated region
    $region38: #{tpu_custom_call.1} parent=1 // pred_check
      %p75 = pneg %p74
    $region39: #{tpu_custom_call.1} parent=1 // pred_check_branch
      %77 = sbr.rel (%p75) target = $region41
    $region40: #{tpu_custom_call.1} parent=1 // pred_region
      %v78 = vld [vmem:[#allocation3] sm:$0xff]
      %v79 = vld [vmem:[#allocation3 + $0x8] sm:$0xff]
      %v80 = vld [vmem:[#allocation6] sm:$0xff]
      %v81 = vld [vmem:[#allocation6 + $0x8] sm:$0xff]
      %v82 = vld [vmem:[#allocation6 + $0x10] sm:$0xff]
      %v83 = vld [vmem:[#allocation6 + $0x18] sm:$0xff]
      %v84 = vld [vmem:[#allocation6 + $0x20] sm:$0xff]
      %v85 = vld [vmem:[#allocation6 + $0x28] sm:$0xff]
      %v86 = vld [vmem:[#allocation6 + $0x30] sm:$0xff]
      %v87 = vld [vmem:[#allocation6 + $0x38] sm:$0xff]
      %v88 = vld [vmem:[#allocation6 + $0x40] sm:$0xff]
      %v89 = vld [vmem:[#allocation6 + $0x48] sm:$0xff]
      %v90 = vld [vmem:[#allocation6 + $0x50] sm:$0xff]
      %v91 = vld [vmem:[#allocation6 + $0x58] sm:$0xff]
      %v92 = vld [vmem:[#allocation6 + $0x60] sm:$0xff]
      %v93 = vld [vmem:[#allocation6 + $0x68] sm:$0xff]
      %v94 = vld [vmem:[#allocation6 + $0x70] sm:$0xff]
      %v95 = vld [vmem:[#allocation6 + $0x78] sm:$0xff]
      %v96 = vld [vmem:[#allocation6 + $0x80] sm:$0xff]
      %v97 = vld [vmem:[#allocation6 + $0x88] sm:$0xff]
      %v98 = vld [vmem:[#allocation6 + $0x90] sm:$0xff]
      %v99 = vld [vmem:[#allocation6 + $0x98] sm:$0xff]
      %v100 = vld [vmem:[#allocation6 + $0xa0] sm:$0xff]
      %v101 = vld [vmem:[#allocation6 + $0xa8] sm:$0xff]
      %v102 = vld [vmem:[#allocation6 + $0xb0] sm:$0xff]
      %v103 = vld [vmem:[#allocation6 + $0xb8] sm:$0xff]
      %v104 = vld [vmem:[#allocation8] sm:$0x3f]
      %v106 = vlaneseq
      %v107 = vshrl.u32 %v106, 7
      %v108 = vsub.s32 0, %v107
      %v109 = vrot.slane %v104, %v108
      %v110 = vlaneseq
      %v111 = vshrl.u32 %v110, 7
      %v112 = vsub.s32 1, %v111
      %v113 = vrot.slane %v104, %v112
      %v114 = vlaneseq
      %v115 = vshrl.u32 %v114, 7
      %v116 = vsub.s32 2, %v115
      %v117 = vrot.slane %v104, %v116
      %v118 = vlaneseq
      %v119 = vshrl.u32 %v118, 7
      %v120 = vsub.s32 3, %v119
      %v121 = vrot.slane %v104, %v120
      %v122 = vlaneseq
      %v123 = vshrl.u32 %v122, 7
      %v124 = vsub.s32 4, %v123
      %v125 = vrot.slane %v104, %v124
      %v126 = vlaneseq
      %v127 = vshrl.u32 %v126, 7
      %v128 = vsub.s32 5, %v127
      %v129 = vrot.slane %v104, %v128
      %vm136 = vcmask 261120
      %v138 = vsel %vm136, %v78, 0
      %v141 = vsel %vm136, %v79, 0
      %143 = vmatprep.subr.mxu0 0.0
      %144 = vmatpush1.msra.mxu0 0.0
      %145 = vmatprep.subr.mxu0 0.0
      %146 = vmatpush1.msra.mxu0 0.0
      %147 = vmatprep.subr.mxu0 0.0
      %148 = vmatpush1.msra.mxu0 0.0
      %149 = vmatprep.subr.mxu0 0.0
      %150 = vmatpush1.msra.mxu0 0.0
      %151 = vmatprep.subr.mxu0 0.0
      %152 = vmatpush1.msra.mxu0 0.0
      %153 = vmatprep.subr.mxu0 0.0
      %154 = vmatpush1.msra.mxu0 0.0
      %155 = vmatprep.subr.mxu0 0.0
      %156 = vmatpush1.msra.mxu0 0.0
      %157 = vmatprep.subr.mxu0 0.0
      %158 = vmatpush1.msra.mxu0 0.0
      %159 = vmatprep.subr.mxu0 0.0
      %160 = vmatpush1.msra.mxu0 0.0
      %161 = vmatprep.subr.mxu0 0.0
      %162 = vmatpush1.msra.mxu0 0.0
      %163 = vmatprep.subr.mxu0 0.0
      %164 = vmatpush1.msra.mxu0 0.0
      %165 = vmatprep.subr.mxu0 0.0
      %166 = vmatpush1.msra.mxu0 0.0
      %167 = vmatprep.subr.mxu0 %v99
      %168 = vmatpush1.msra.mxu0 %v98
      %169 = vmatprep.subr.mxu0 %v93
      %170 = vmatpush1.msra.mxu0 %v92
      %171 = vmatprep.subr.mxu0 %v87
      %172 = vmatpush1.msra.mxu0 %v86
      %173 = vmatprep.subr.mxu0 %v81
      %174 = vmatpush1.msra.mxu0 %v80
      %175 = vmatprep.subr.mxu0 0.0
      %176 = vmatpush2.msra.mxu0 0.0
      %177 = vmatprep.subr.mxu0 0.0
      %178 = vmatpush2.msra.mxu0 0.0
      %179 = vmatprep.subr.mxu0 0.0
      %180 = vmatpush2.msra.mxu0 0.0
      %181 = vmatprep.subr.mxu0 0.0
      %182 = vmatpush2.msra.mxu0 0.0
      %183 = vmatprep.subr.mxu0 0.0
      %184 = vmatpush2.msra.mxu0 0.0
      %185 = vmatprep.subr.mxu0 0.0
      %186 = vmatpush2.msra.mxu0 0.0
      %187 = vmatprep.subr.mxu0 0.0
      %188 = vmatpush2.msra.mxu0 0.0
      %189 = vmatprep.subr.mxu0 0.0
      %190 = vmatpush2.msra.mxu0 0.0
      %191 = vmatprep.subr.mxu0 0.0
      %192 = vmatpush2.msra.mxu0 0.0
      %193 = vmatprep.subr.mxu0 0.0
      %194 = vmatpush2.msra.mxu0 0.0
      %195 = vmatprep.subr.mxu0 0.0
      %196 = vmatpush2.msra.mxu0 0.0
      %197 = vmatprep.subr.mxu0 0.0
      %198 = vmatpush2.msra.mxu0 0.0
      %199 = vmatprep.subr.mxu0 0.0
      %200 = vmatpush2.msra.mxu0 0.0
      %201 = vmatprep.subr.mxu0 0.0
      %202 = vmatpush2.msra.mxu0 0.0
      %203 = vmatprep.subr.mxu0 0.0
      %204 = vmatpush2.msra.mxu0 0.0
      %205 = vmatprep.subr.mxu0 0.0
      %206 = vmatpush2.msra.mxu0 0.0
      %207 = vmatprep.mubr.f32.mxu0 0.0
      %208 = vmatmul.mubr.f32.gmra.mxu0 %v138
      %v209 = vpop.f32.mrf.mxu0
      %v210 = vadd.f32 %v109, %v209
      %v211 = vpop.f32.mrf.mxu0
      %v212 = vadd.f32 %v113, %v211
      %213 = vmatprep.mubr.f32.mxu0 0.0
      %214 = vmatmul.mubr.f32.gmra.mxu0 %v141
      %v215 = vpop.f32.mrf.mxu0
      %v216 = vadd.f32 %v109, %v215
      %v217 = vpop.f32.mrf.mxu0
      %v218 = vadd.f32 %v113, %v217
      %219 = vdwg.mxu0
      %220 = vmatprep.subr.mxu0 0.0
      %221 = vmatpush1.msra.mxu0 0.0
      %222 = vmatprep.subr.mxu0 0.0
      %223 = vmatpush1.msra.mxu0 0.0
      %224 = vmatprep.subr.mxu0 0.0
      %225 = vmatpush1.msra.mxu0 0.0
      %226 = vmatprep.subr.mxu0 0.0
      %227 = vmatpush1.msra.mxu0 0.0
      %228 = vmatprep.subr.mxu0 0.0
      %229 = vmatpush1.msra.mxu0 0.0
      %230 = vmatprep.subr.mxu0 0.0
      %231 = vmatpush1.msra.mxu0 0.0
      %232 = vmatprep.subr.mxu0 0.0
      %233 = vmatpush1.msra.mxu0 0.0
      %234 = vmatprep.subr.mxu0 0.0
      %235 = vmatpush1.msra.mxu0 0.0
      %236 = vmatprep.subr.mxu0 0.0
      %237 = vmatpush1.msra.mxu0 0.0
      %238 = vmatprep.subr.mxu0 0.0
      %239 = vmatpush1.msra.mxu0 0.0
      %240 = vmatprep.subr.mxu0 0.0
      %241 = vmatpush1.msra.mxu0 0.0
      %242 = vmatprep.subr.mxu0 0.0
      %243 = vmatpush1.msra.mxu0 0.0
      %244 = vmatprep.subr.mxu0 %v101
      %245 = vmatpush1.msra.mxu0 %v100
      %246 = vmatprep.subr.mxu0 %v95
      %247 = vmatpush1.msra.mxu0 %v94
      %248 = vmatprep.subr.mxu0 %v89
      %249 = vmatpush1.msra.mxu0 %v88
      %250 = vmatprep.subr.mxu0 %v83
      %251 = vmatpush1.msra.mxu0 %v82
      %252 = vmatprep.subr.mxu0 0.0
      %253 = vmatpush2.msra.mxu0 0.0
      %254 = vmatprep.subr.mxu0 0.0
      %255 = vmatpush2.msra.mxu0 0.0
      %256 = vmatprep.subr.mxu0 0.0
      %257 = vmatpush2.msra.mxu0 0.0
      %258 = vmatprep.subr.mxu0 0.0
      %259 = vmatpush2.msra.mxu0 0.0
      %260 = vmatprep.subr.mxu0 0.0
      %261 = vmatpush2.msra.mxu0 0.0
      %262 = vmatprep.subr.mxu0 0.0
      %263 = vmatpush2.msra.mxu0 0.0
      %264 = vmatprep.subr.mxu0 0.0
      %265 = vmatpush2.msra.mxu0 0.0
      %266 = vmatprep.subr.mxu0 0.0
      %267 = vmatpush2.msra.mxu0 0.0
      %268 = vmatprep.subr.mxu0 0.0
      %269 = vmatpush2.msra.mxu0 0.0
      %270 = vmatprep.subr.mxu0 0.0
      %271 = vmatpush2.msra.mxu0 0.0
      %272 = vmatprep.subr.mxu0 0.0
      %273 = vmatpush2.msra.mxu0 0.0
      %274 = vmatprep.subr.mxu0 0.0
      %275 = vmatpush2.msra.mxu0 0.0
      %276 = vmatprep.subr.mxu0 0.0
      %277 = vmatpush2.msra.mxu0 0.0
      %278 = vmatprep.subr.mxu0 0.0
      %279 = vmatpush2.msra.mxu0 0.0
      %280 = vmatprep.subr.mxu0 0.0
      %281 = vmatpush2.msra.mxu0 0.0
      %282 = vmatprep.subr.mxu0 0.0
      %283 = vmatpush2.msra.mxu0 0.0
      %284 = vmatprep.mubr.f32.mxu0 0.0
      %285 = vmatmul.mubr.f32.gmra.mxu0 %v138
      %v286 = vpop.f32.mrf.mxu0
      %v287 = vadd.f32 %v117, %v286
      %v288 = vpop.f32.mrf.mxu0
      %v289 = vadd.f32 %v121, %v288
      %290 = vmatprep.mubr.f32.mxu0 0.0
      %291 = vmatmul.mubr.f32.gmra.mxu0 %v141
      %v292 = vpop.f32.mrf.mxu0
      %v293 = vadd.f32 %v117, %v292
      %v294 = vpop.f32.mrf.mxu0
      %v295 = vadd.f32 %v121, %v294
      %296 = vdwg.mxu0
      %297 = vmatprep.subr.mxu0 0.0
      %298 = vmatpush1.msra.mxu0 0.0
      %299 = vmatprep.subr.mxu0 0.0
      %300 = vmatpush1.msra.mxu0 0.0
      %301 = vmatprep.subr.mxu0 0.0
      %302 = vmatpush1.msra.mxu0 0.0
      %303 = vmatprep.subr.mxu0 0.0
      %304 = vmatpush1.msra.mxu0 0.0
      %305 = vmatprep.subr.mxu0 0.0
      %306 = vmatpush1.msra.mxu0 0.0
      %307 = vmatprep.subr.mxu0 0.0
      %308 = vmatpush1.msra.mxu0 0.0
      %309 = vmatprep.subr.mxu0 0.0
      %310 = vmatpush1.msra.mxu0 0.0
      %311 = vmatprep.subr.mxu0 0.0
      %312 = vmatpush1.msra.mxu0 0.0
      %313 = vmatprep.subr.mxu0 0.0
      %314 = vmatpush1.msra.mxu0 0.0
      %315 = vmatprep.subr.mxu0 0.0
      %316 = vmatpush1.msra.mxu0 0.0
      %317 = vmatprep.subr.mxu0 0.0
      %318 = vmatpush1.msra.mxu0 0.0
      %319 = vmatprep.subr.mxu0 0.0
      %320 = vmatpush1.msra.mxu0 0.0
      %321 = vmatprep.subr.mxu0 %v103
      %322 = vmatpush1.msra.mxu0 %v102
      %323 = vmatprep.subr.mxu0 %v97
      %324 = vmatpush1.msra.mxu0 %v96
      %325 = vmatprep.subr.mxu0 %v91
      %326 = vmatpush1.msra.mxu0 %v90
      %327 = vmatprep.subr.mxu0 %v85
      %328 = vmatpush1.msra.mxu0 %v84
      %329 = vmatprep.subr.mxu0 0.0
      %330 = vmatpush2.msra.mxu0 0.0
      %331 = vmatprep.subr.mxu0 0.0
      %332 = vmatpush2.msra.mxu0 0.0
      %333 = vmatprep.subr.mxu0 0.0
      %334 = vmatpush2.msra.mxu0 0.0
      %335 = vmatprep.subr.mxu0 0.0
      %336 = vmatpush2.msra.mxu0 0.0
      %337 = vmatprep.subr.mxu0 0.0
      %338 = vmatpush2.msra.mxu0 0.0
      %339 = vmatprep.subr.mxu0 0.0
      %340 = vmatpush2.msra.mxu0 0.0
      %341 = vmatprep.subr.mxu0 0.0
      %342 = vmatpush2.msra.mxu0 0.0
      %343 = vmatprep.subr.mxu0 0.0
      %344 = vmatpush2.msra.mxu0 0.0
      %345 = vmatprep.subr.mxu0 0.0
      %346 = vmatpush2.msra.mxu0 0.0
      %347 = vmatprep.subr.mxu0 0.0
      %348 = vmatpush2.msra.mxu0 0.0
      %349 = vmatprep.subr.mxu0 0.0
      %350 = vmatpush2.msra.mxu0 0.0
      %351 = vmatprep.subr.mxu0 0.0
      %352 = vmatpush2.msra.mxu0 0.0
      %353 = vmatprep.subr.mxu0 0.0
      %354 = vmatpush2.msra.mxu0 0.0
      %355 = vmatprep.subr.mxu0 0.0
      %356 = vmatpush2.msra.mxu0 0.0
      %357 = vmatprep.subr.mxu0 0.0
      %358 = vmatpush2.msra.mxu0 0.0
      %359 = vmatprep.subr.mxu0 0.0
      %360 = vmatpush2.msra.mxu0 0.0
      %361 = vmatprep.mubr.f32.mxu0 0.0
      %362 = vmatmul.mubr.f32.gmra.mxu0 %v138
      %v363 = vpop.f32.mrf.mxu0
      %v364 = vadd.f32 %v125, %v363
      %v365 = vpop.f32.mrf.mxu0
      %v366 = vadd.f32 %v129, %v365
      %367 = vmatprep.mubr.f32.mxu0 0.0
      %368 = vmatmul.mubr.f32.gmra.mxu0 %v141
      %v369 = vpop.f32.mrf.mxu0
      %v370 = vadd.f32 %v125, %v369
      %v371 = vpop.f32.mrf.mxu0
      %v372 = vadd.f32 %v129, %v371
      %373 = vdwg.mxu0
      %v374 = vmul.f32 %v210, 0.5
      %v375 = vmul.f32 %v212, 0.5
      %v376 = vmul.f32 %v287, 0.5
      %v377 = vmul.f32 %v289, 0.5
      %v378 = vmul.f32 %v364, 0.5
      %v379 = vmul.f32 %v366, 0.5
      %v380 = vmul.f32 %v216, 0.5
      %v381 = vmul.f32 %v218, 0.5
      %v382 = vmul.f32 %v293, 0.5
      %v383 = vmul.f32 %v295, 0.5
      %v384 = vmul.f32 %v370, 0.5
      %v385 = vmul.f32 %v372, 0.5
      %v386 = vmul.f32 %v210, 0.70710677
      %v387 = vmul.f32 %v212, 0.70710677
      %v388 = vmul.f32 %v287, 0.70710677
      %v389 = vmul.f32 %v289, 0.70710677
      %v390 = vmul.f32 %v364, 0.70710677
      %v391 = vmul.f32 %v366, 0.70710677
      %v392 = vmul.f32 %v216, 0.70710677
      %v393 = vmul.f32 %v218, 0.70710677
      %v394 = vmul.f32 %v293, 0.70710677
      %v395 = vmul.f32 %v295, 0.70710677
      %v396 = vmul.f32 %v370, 0.70710677
      %v397 = vmul.f32 %v372, 0.70710677
      %v398 = verf.f32.pop %v386
      %v399 = verf.f32.pop %v387
      %v400 = verf.f32.pop %v388
      %v401 = verf.f32.pop %v389
      %v402 = verf.f32.pop %v390
      %v403 = verf.f32.pop %v391
      %v404 = verf.f32.pop %v392
      %v405 = verf.f32.pop %v393
      %v406 = verf.f32.pop %v394
      %v407 = verf.f32.pop %v395
      %v408 = verf.f32.pop %v396
      %v409 = verf.f32.pop %v397
      %v410 = vadd.f32 %v398, 1.0
      %v411 = vadd.f32 %v399, 1.0
      %v412 = vadd.f32 %v400, 1.0
      %v413 = vadd.f32 %v401, 1.0
      %v414 = vadd.f32 %v402, 1.0
      %v415 = vadd.f32 %v403, 1.0
      %v416 = vadd.f32 %v404, 1.0
      %v417 = vadd.f32 %v405, 1.0
      %v418 = vadd.f32 %v406, 1.0
      %v419 = vadd.f32 %v407, 1.0
      %v420 = vadd.f32 %v408, 1.0
      %v421 = vadd.f32 %v409, 1.0
      %v422 = vmul.f32 %v374, %v410
      %v423 = vmul.f32 %v375, %v411
      %v424 = vmul.f32 %v376, %v412
      %v425 = vmul.f32 %v377, %v413
      %v426 = vmul.f32 %v378, %v414
      %v427 = vmul.f32 %v379, %v415
      %v428 = vmul.f32 %v380, %v416
      %v429 = vmul.f32 %v381, %v417
      %v430 = vmul.f32 %v382, %v418
      %v431 = vmul.f32 %v383, %v419
      %v432 = vmul.f32 %v384, %v420
      %v433 = vmul.f32 %v385, %v421
      %434 = vst [vmem:[#allocation2] sm:$0xff] %v422
      %435 = vst [vmem:[#allocation2 + $0x8] sm:$0xff] %v423
      %436 = vst [vmem:[#allocation2 + $0x10] sm:$0xff] %v424
      %437 = vst [vmem:[#allocation2 + $0x18] sm:$0xff] %v425
      %438 = vst [vmem:[#allocation2 + $0x20] sm:$0xff] %v426
      %439 = vst [vmem:[#allocation2 + $0x28] sm:$0xff] %v427
      %440 = vst [vmem:[#allocation2 + $0x30] sm:$0xff] %v428
      %441 = vst [vmem:[#allocation2 + $0x38] sm:$0xff] %v429
      %442 = vst [vmem:[#allocation2 + $0x40] sm:$0xff] %v430
      %443 = vst [vmem:[#allocation2 + $0x48] sm:$0xff] %v431
      %444 = vst [vmem:[#allocation2 + $0x50] sm:$0xff] %v432
      %445 = vst [vmem:[#allocation2 + $0x58] sm:$0xff] %v433
    $region41: #{tpu_custom_call.1} parent=1 // pred_fallthru
      _
    %v446 = vld [vmem:[#allocation2] sm:$0xff]
    %v447 = vld [vmem:[#allocation2 + $0x8] sm:$0xff]
    %v448 = vld [vmem:[#allocation2 + $0x10] sm:$0xff]
    %v449 = vld [vmem:[#allocation2 + $0x18] sm:$0xff]
    %v450 = vld [vmem:[#allocation2 + $0x20] sm:$0xff]
    %v451 = vld [vmem:[#allocation2 + $0x28] sm:$0xff]
    %v452 = vld [vmem:[#allocation2 + $0x30] sm:$0xff]
    %v453 = vld [vmem:[#allocation2 + $0x38] sm:$0xff]
    %v454 = vld [vmem:[#allocation2 + $0x40] sm:$0xff]
    %v455 = vld [vmem:[#allocation2 + $0x48] sm:$0xff]
    %v456 = vld [vmem:[#allocation2 + $0x50] sm:$0xff]
    %v457 = vld [vmem:[#allocation2 + $0x58] sm:$0xff]
    %v458 = vld [vmem:[#allocation9] sm:$0xff]
    %v459 = vld [vmem:[#allocation9 + $0x8] sm:$0xff]
    %v460 = vld [vmem:[#allocation9 + $0x10] sm:$0xff]
    %v461 = vld [vmem:[#allocation9 + $0x18] sm:$0xff]
    %v462 = vld [vmem:[#allocation9 + $0x20] sm:$0xff]
    %v463 = vld [vmem:[#allocation9 + $0x28] sm:$0xff]
    %v464 = vld [vmem:[#allocation9 + $0x30] sm:$0xff]
    %v465 = vld [vmem:[#allocation9 + $0x38] sm:$0xff]
    %v466 = vld [vmem:[#allocation9 + $0x40] sm:$0xff]
    %v467 = vld [vmem:[#allocation9 + $0x48] sm:$0xff]
    %v468 = vld [vmem:[#allocation9 + $0x50] sm:$0xff]
    %v469 = vld [vmem:[#allocation9 + $0x58] sm:$0xff]
    %v470 = vld [vmem:[#allocation9 + $0x60] sm:$0xff]
    %v471 = vld [vmem:[#allocation9 + $0x68] sm:$0xff]
    %v472 = vld [vmem:[#allocation9 + $0x70] sm:$0xff]
    %v473 = vld [vmem:[#allocation9 + $0x78] sm:$0xff]
    %v474 = vld [vmem:[#allocation9 + $0x80] sm:$0xff]
    %v475 = vld [vmem:[#allocation9 + $0x88] sm:$0xff]
    %v476 = vld [vmem:[#allocation9 + $0x90] sm:$0xff]
    %v477 = vld [vmem:[#allocation9 + $0x98] sm:$0xff]
    %v478 = vld [vmem:[#allocation9 + $0xa0] sm:$0xff]
    %v479 = vld [vmem:[#allocation9 + $0xa8] sm:$0xff]
    %v480 = vld [vmem:[#allocation9 + $0xb0] sm:$0xff]
    %v481 = vld [vmem:[#allocation9 + $0xb8] sm:$0xff]
    %v482 = vld [vmem:[#allocation9 + $0xc0] sm:$0xff]
    %v483 = vld [vmem:[#allocation9 + $0xc8] sm:$0xff]
    %v484 = vld [vmem:[#allocation9 + $0xd0] sm:$0xff]
    %v485 = vld [vmem:[#allocation9 + $0xd8] sm:$0xff]
    %v486 = vld [vmem:[#allocation9 + $0xe0] sm:$0xff]
    %v487 = vld [vmem:[#allocation9 + $0xe8] sm:$0xff]
    %v488 = vld [vmem:[#allocation9 + $0xf0] sm:$0xff]
    %v489 = vld [vmem:[#allocation9 + $0xf8] sm:$0xff]
    %v490 = vld [vmem:[#allocation9 + $0x100] sm:$0xff]
    %v491 = vld [vmem:[#allocation9 + $0x108] sm:$0xff]
    %v492 = vld [vmem:[#allocation9 + $0x110] sm:$0xff]
    %v493 = vld [vmem:[#allocation9 + $0x118] sm:$0xff]
    %v494 = vld [vmem:[#allocation9 + $0x120] sm:$0xff]
    %v495 = vld [vmem:[#allocation9 + $0x128] sm:$0xff]
    %v496 = vld [vmem:[#allocation9 + $0x130] sm:$0xff]
    %v497 = vld [vmem:[#allocation9 + $0x138] sm:$0xff]
    %v498 = vld [vmem:[#allocation9 + $0x140] sm:$0xff]
    %v499 = vld [vmem:[#allocation9 + $0x148] sm:$0xff]
    %v500 = vld [vmem:[#allocation9 + $0x150] sm:$0xff]
    %v501 = vld [vmem:[#allocation9 + $0x158] sm:$0xff]
    %v502 = vld [vmem:[#allocation9 + $0x160] sm:$0xff]
    %v503 = vld [vmem:[#allocation9 + $0x168] sm:$0xff]
    %v504 = vld [vmem:[#allocation9 + $0x170] sm:$0xff]
    %v505 = vld [vmem:[#allocation9 + $0x178] sm:$0xff]
    %v506 = vld [vmem:[#allocation9 + $0x180] sm:$0xff]
    %v507 = vld [vmem:[#allocation9 + $0x188] sm:$0xff]
    %v508 = vld [vmem:[#allocation9 + $0x190] sm:$0xff]
    %v509 = vld [vmem:[#allocation9 + $0x198] sm:$0xff]
    %v510 = vld [vmem:[#allocation9 + $0x1a0] sm:$0xff]
    %v511 = vld [vmem:[#allocation9 + $0x1a8] sm:$0xff]
    %v512 = vld [vmem:[#allocation9 + $0x1b0] sm:$0xff]
    %v513 = vld [vmem:[#allocation9 + $0x1b8] sm:$0xff]
    %v514 = vld [vmem:[#allocation9 + $0x1c0] sm:$0xff]
    %v515 = vld [vmem:[#allocation9 + $0x1c8] sm:$0xff]
    %v516 = vld [vmem:[#allocation9 + $0x1d0] sm:$0xff]
    %v517 = vld [vmem:[#allocation9 + $0x1d8] sm:$0xff]
    %v518 = vld [vmem:[#allocation9 + $0x1e0] sm:$0xff]
    %v519 = vld [vmem:[#allocation9 + $0x1e8] sm:$0xff]
    %v520 = vld [vmem:[#allocation9 + $0x1f0] sm:$0xff]
    %v521 = vld [vmem:[#allocation9 + $0x1f8] sm:$0xff]
    %v522 = vld [vmem:[#allocation9 + $0x200] sm:$0xff]
    %v523 = vld [vmem:[#allocation9 + $0x208] sm:$0xff]
    %v524 = vld [vmem:[#allocation9 + $0x210] sm:$0xff]
    %v525 = vld [vmem:[#allocation9 + $0x218] sm:$0xff]
    %v526 = vld [vmem:[#allocation9 + $0x220] sm:$0xff]
    %v527 = vld [vmem:[#allocation9 + $0x228] sm:$0xff]
    %v528 = vld [vmem:[#allocation9 + $0x230] sm:$0xff]
    %v529 = vld [vmem:[#allocation9 + $0x238] sm:$0xff]
    %v530 = vld [vmem:[#allocation9 + $0x240] sm:$0xff]
    %v531 = vld [vmem:[#allocation9 + $0x248] sm:$0xff]
    %v532 = vld [vmem:[#allocation9 + $0x250] sm:$0xff]
    %v533 = vld [vmem:[#allocation9 + $0x258] sm:$0xff]
    %v534 = vld [vmem:[#allocation9 + $0x260] sm:$0xff]
    %v535 = vld [vmem:[#allocation9 + $0x268] sm:$0xff]
    %v536 = vld [vmem:[#allocation9 + $0x270] sm:$0xff]
    %v537 = vld [vmem:[#allocation9 + $0x278] sm:$0xff]
    %v538 = vld [vmem:[#allocation9 + $0x280] sm:$0xff]
    %v539 = vld [vmem:[#allocation9 + $0x288] sm:$0xff]
    %v540 = vld [vmem:[#allocation9 + $0x290] sm:$0xff]
    %v541 = vld [vmem:[#allocation9 + $0x298] sm:$0xff]
    %v542 = vld [vmem:[#allocation9 + $0x2a0] sm:$0xff]
    %v543 = vld [vmem:[#allocation9 + $0x2a8] sm:$0xff]
    %v544 = vld [vmem:[#allocation9 + $0x2b0] sm:$0xff]
    %v545 = vld [vmem:[#allocation9 + $0x2b8] sm:$0xff]
    %v546 = vld [vmem:[#allocation9 + $0x2c0] sm:$0xff]
    %v547 = vld [vmem:[#allocation9 + $0x2c8] sm:$0xff]
    %v548 = vld [vmem:[#allocation9 + $0x2d0] sm:$0xff]
    %v549 = vld [vmem:[#allocation9 + $0x2d8] sm:$0xff]
    %v550 = vld [vmem:[#allocation9 + $0x2e0] sm:$0xff]
    %v551 = vld [vmem:[#allocation9 + $0x2e8] sm:$0xff]
    %v552 = vld [vmem:[#allocation9 + $0x2f0] sm:$0xff]
    %v553 = vld [vmem:[#allocation9 + $0x2f8] sm:$0xff]
    %v554 = vld [vmem:[#allocation9 + $0x300] sm:$0xff]
    %v555 = vld [vmem:[#allocation9 + $0x308] sm:$0xff]
    %v556 = vld [vmem:[#allocation9 + $0x310] sm:$0xff]
    %v557 = vld [vmem:[#allocation9 + $0x318] sm:$0xff]
    %v558 = vld [vmem:[#allocation9 + $0x320] sm:$0xff]
    %v559 = vld [vmem:[#allocation9 + $0x328] sm:$0xff]
    %v560 = vld [vmem:[#allocation9 + $0x330] sm:$0xff]
    %v561 = vld [vmem:[#allocation9 + $0x338] sm:$0xff]
    %v562 = vld [vmem:[#allocation9 + $0x340] sm:$0xff]
    %v563 = vld [vmem:[#allocation9 + $0x348] sm:$0xff]
    %v564 = vld [vmem:[#allocation9 + $0x350] sm:$0xff]
    %v565 = vld [vmem:[#allocation9 + $0x358] sm:$0xff]
    %v566 = vld [vmem:[#allocation9 + $0x360] sm:$0xff]
    %v567 = vld [vmem:[#allocation9 + $0x368] sm:$0xff]
    %v568 = vld [vmem:[#allocation9 + $0x370] sm:$0xff]
    %v569 = vld [vmem:[#allocation9 + $0x378] sm:$0xff]
    %v570 = vld [vmem:[#allocation9 + $0x380] sm:$0xff]
    %v571 = vld [vmem:[#allocation9 + $0x388] sm:$0xff]
    %v572 = vld [vmem:[#allocation9 + $0x390] sm:$0xff]
    %v573 = vld [vmem:[#allocation9 + $0x398] sm:$0xff]
    %v574 = vld [vmem:[#allocation9 + $0x3a0] sm:$0xff]
    %v575 = vld [vmem:[#allocation9 + $0x3a8] sm:$0xff]
    %v576 = vld [vmem:[#allocation9 + $0x3b0] sm:$0xff]
    %v577 = vld [vmem:[#allocation9 + $0x3b8] sm:$0xff]
    %v578 = vld [vmem:[#allocation9 + $0x3c0] sm:$0xff]
    %v579 = vld [vmem:[#allocation9 + $0x3c8] sm:$0xff]
    %v580 = vld [vmem:[#allocation9 + $0x3d0] sm:$0xff]
    %v581 = vld [vmem:[#allocation9 + $0x3d8] sm:$0xff]
    %v582 = vld [vmem:[#allocation9 + $0x3e0] sm:$0xff]
    %v583 = vld [vmem:[#allocation9 + $0x3e8] sm:$0xff]
    %v584 = vld [vmem:[#allocation9 + $0x3f0] sm:$0xff]
    %v585 = vld [vmem:[#allocation9 + $0x3f8] sm:$0xff]
    %v586 = vld [vmem:[#allocation9 + $0x400] sm:$0xff]
    %v587 = vld [vmem:[#allocation9 + $0x408] sm:$0xff]
    %v588 = vld [vmem:[#allocation9 + $0x410] sm:$0xff]
    %v589 = vld [vmem:[#allocation9 + $0x418] sm:$0xff]
    %v590 = vld [vmem:[#allocation9 + $0x420] sm:$0xff]
    %v591 = vld [vmem:[#allocation9 + $0x428] sm:$0xff]
    %v592 = vld [vmem:[#allocation9 + $0x430] sm:$0xff]
    %v593 = vld [vmem:[#allocation9 + $0x438] sm:$0xff]
    %v594 = vld [vmem:[#allocation9 + $0x440] sm:$0xff]
    %v595 = vld [vmem:[#allocation9 + $0x448] sm:$0xff]
    %v596 = vld [vmem:[#allocation9 + $0x450] sm:$0xff]
    %v597 = vld [vmem:[#allocation9 + $0x458] sm:$0xff]
    %v598 = vld [vmem:[#allocation9 + $0x460] sm:$0xff]
    %v599 = vld [vmem:[#allocation9 + $0x468] sm:$0xff]
    %v600 = vld [vmem:[#allocation9 + $0x470] sm:$0xff]
    %v601 = vld [vmem:[#allocation9 + $0x478] sm:$0xff]
    %v602 = vld [vmem:[#allocation9 + $0x480] sm:$0xff]
    %v603 = vld [vmem:[#allocation9 + $0x488] sm:$0xff]
    %v604 = vld [vmem:[#allocation9 + $0x490] sm:$0xff]
    %v605 = vld [vmem:[#allocation9 + $0x498] sm:$0xff]
    %v606 = vld [vmem:[#allocation9 + $0x4a0] sm:$0xff]
    %v607 = vld [vmem:[#allocation9 + $0x4a8] sm:$0xff]
    %v608 = vld [vmem:[#allocation9 + $0x4b0] sm:$0xff]
    %v609 = vld [vmem:[#allocation9 + $0x4b8] sm:$0xff]
    %v610 = vld [vmem:[#allocation9 + $0x4c0] sm:$0xff]
    %v611 = vld [vmem:[#allocation9 + $0x4c8] sm:$0xff]
    %v612 = vld [vmem:[#allocation9 + $0x4d0] sm:$0xff]
    %v613 = vld [vmem:[#allocation9 + $0x4d8] sm:$0xff]
    %v614 = vld [vmem:[#allocation9 + $0x4e0] sm:$0xff]
    %v615 = vld [vmem:[#allocation9 + $0x4e8] sm:$0xff]
    %v616 = vld [vmem:[#allocation9 + $0x4f0] sm:$0xff]
    %v617 = vld [vmem:[#allocation9 + $0x4f8] sm:$0xff]
    %v618 = vld [vmem:[#allocation9 + $0x500] sm:$0xff]
    %v619 = vld [vmem:[#allocation9 + $0x508] sm:$0xff]
    %v620 = vld [vmem:[#allocation9 + $0x510] sm:$0xff]
    %v621 = vld [vmem:[#allocation9 + $0x518] sm:$0xff]
    %v622 = vld [vmem:[#allocation9 + $0x520] sm:$0xff]
    %v623 = vld [vmem:[#allocation9 + $0x528] sm:$0xff]
    %v624 = vld [vmem:[#allocation9 + $0x530] sm:$0xff]
    %v625 = vld [vmem:[#allocation9 + $0x538] sm:$0xff]
    %v626 = vld [vmem:[#allocation9 + $0x540] sm:$0xff]
    %v627 = vld [vmem:[#allocation9 + $0x548] sm:$0xff]
    %v628 = vld [vmem:[#allocation9 + $0x550] sm:$0xff]
    %v629 = vld [vmem:[#allocation9 + $0x558] sm:$0xff]
    %v630 = vld [vmem:[#allocation9 + $0x560] sm:$0xff]
    %v631 = vld [vmem:[#allocation9 + $0x568] sm:$0xff]
    %v632 = vld [vmem:[#allocation9 + $0x570] sm:$0xff]
    %v633 = vld [vmem:[#allocation9 + $0x578] sm:$0xff]
    %v634 = vld [vmem:[#allocation9 + $0x580] sm:$0xff]
    %v635 = vld [vmem:[#allocation9 + $0x588] sm:$0xff]
    %v636 = vld [vmem:[#allocation9 + $0x590] sm:$0xff]
    %v637 = vld [vmem:[#allocation9 + $0x598] sm:$0xff]
    %v638 = vld [vmem:[#allocation9 + $0x5a0] sm:$0xff]
    %v639 = vld [vmem:[#allocation9 + $0x5a8] sm:$0xff]
    %v640 = vld [vmem:[#allocation9 + $0x5b0] sm:$0xff]
    %v641 = vld [vmem:[#allocation9 + $0x5b8] sm:$0xff]
    %v642 = vld [vmem:[#allocation9 + $0x5c0] sm:$0xff]
    %v643 = vld [vmem:[#allocation9 + $0x5c8] sm:$0xff]
    %v644 = vld [vmem:[#allocation9 + $0x5d0] sm:$0xff]
    %v645 = vld [vmem:[#allocation9 + $0x5d8] sm:$0xff]
    %v646 = vld [vmem:[#allocation9 + $0x5e0] sm:$0xff]
    %v647 = vld [vmem:[#allocation9 + $0x5e8] sm:$0xff]
    %v648 = vld [vmem:[#allocation9 + $0x5f0] sm:$0xff]
    %v649 = vld [vmem:[#allocation9 + $0x5f8] sm:$0xff]
    %v650 = vld [vmem:[%s4] sm:$0x3]
    %v652 = vlaneseq
    %v653 = vshrl.u32 %v652, 7
    %v654 = vsub.s32 0, %v653
    %v655 = vrot.slane %v650, %v654
    %v656 = vlaneseq
    %v657 = vshrl.u32 %v656, 7
    %v658 = vsub.s32 1, %v657
    %v659 = vrot.slane %v650, %v658
    %662 = vmatprep.subr.mxu0 %v489
    %663 = vmatpush1.msra.mxu0 %v488
    %664 = vmatprep.subr.mxu0 %v487
    %665 = vmatpush1.msra.mxu0 %v486
    %666 = vmatprep.subr.mxu0 %v485
    %667 = vmatpush1.msra.mxu0 %v484
    %668 = vmatprep.subr.mxu0 %v483
    %669 = vmatpush1.msra.mxu0 %v482
    %670 = vmatprep.subr.mxu0 %v481
    %671 = vmatpush1.msra.mxu0 %v480
    %672 = vmatprep.subr.mxu0 %v479
    %673 = vmatpush1.msra.mxu0 %v478
    %674 = vmatprep.subr.mxu0 %v477
    %675 = vmatpush1.msra.mxu0 %v476
    %676 = vmatprep.subr.mxu0 %v475
    %677 = vmatpush1.msra.mxu0 %v474
    %678 = vmatprep.subr.mxu0 %v473
    %679 = vmatpush1.msra.mxu0 %v472
    %680 = vmatprep.subr.mxu0 %v471
    %681 = vmatpush1.msra.mxu0 %v470
    %682 = vmatprep.subr.mxu0 %v469
    %683 = vmatpush1.msra.mxu0 %v468
    %684 = vmatprep.subr.mxu0 %v467
    %685 = vmatpush1.msra.mxu0 %v466
    %686 = vmatprep.subr.mxu0 %v465
    %687 = vmatpush1.msra.mxu0 %v464
    %688 = vmatprep.subr.mxu0 %v463
    %689 = vmatpush1.msra.mxu0 %v462
    %690 = vmatprep.subr.mxu0 %v461
    %691 = vmatpush1.msra.mxu0 %v460
    %692 = vmatprep.subr.mxu0 %v459
    %693 = vmatpush1.msra.mxu0 %v458
    %694 = vmatprep.subr.mxu0 %v521
    %695 = vmatpush2.msra.mxu0 %v520
    %696 = vmatprep.subr.mxu0 %v519
    %697 = vmatpush2.msra.mxu0 %v518
    %698 = vmatprep.subr.mxu0 %v517
    %699 = vmatpush2.msra.mxu0 %v516
    %700 = vmatprep.subr.mxu0 %v515
    %701 = vmatpush2.msra.mxu0 %v514
    %702 = vmatprep.subr.mxu0 %v513
    %703 = vmatpush2.msra.mxu0 %v512
    %704 = vmatprep.subr.mxu0 %v511
    %705 = vmatpush2.msra.mxu0 %v510
    %706 = vmatprep.subr.mxu0 %v509
    %707 = vmatpush2.msra.mxu0 %v508
    %708 = vmatprep.subr.mxu0 %v507
    %709 = vmatpush2.msra.mxu0 %v506
    %710 = vmatprep.subr.mxu0 %v505
    %711 = vmatpush2.msra.mxu0 %v504
    %712 = vmatprep.subr.mxu0 %v503
    %713 = vmatpush2.msra.mxu0 %v502
    %714 = vmatprep.subr.mxu0 %v501
    %715 = vmatpush2.msra.mxu0 %v500
    %716 = vmatprep.subr.mxu0 %v499
    %717 = vmatpush2.msra.mxu0 %v498
    %718 = vmatprep.subr.mxu0 %v497
    %719 = vmatpush2.msra.mxu0 %v496
    %720 = vmatprep.subr.mxu0 %v495
    %721 = vmatpush2.msra.mxu0 %v494
    %722 = vmatprep.subr.mxu0 %v493
    %723 = vmatpush2.msra.mxu0 %v492
    %724 = vmatprep.subr.mxu0 %v491
    %725 = vmatpush2.msra.mxu0 %v490
    %726 = vmatprep.mubr.f32.mxu0 %v447
    %727 = vmatmul.mubr.f32.gmra.mxu0 %v446
    %v728 = vpop.f32.mrf.mxu0
    %v729 = vadd.f32 %v655, %v728
    %v730 = vpop.f32.mrf.mxu0
    %v731 = vadd.f32 %v659, %v730
    %732 = vmatprep.mubr.f32.mxu0 %v453
    %733 = vmatmul.mubr.f32.gmra.mxu0 %v452
    %v734 = vpop.f32.mrf.mxu0
    %v735 = vadd.f32 %v655, %v734
    %v736 = vpop.f32.mrf.mxu0
    %v737 = vadd.f32 %v659, %v736
    %738 = vdwg.mxu0
    %739 = vmatprep.subr.mxu0 %v553
    %740 = vmatpush1.msra.mxu0 %v552
    %741 = vmatprep.subr.mxu0 %v551
    %742 = vmatpush1.msra.mxu0 %v550
    %743 = vmatprep.subr.mxu0 %v549
    %744 = vmatpush1.msra.mxu0 %v548
    %745 = vmatprep.subr.mxu0 %v547
    %746 = vmatpush1.msra.mxu0 %v546
    %747 = vmatprep.subr.mxu0 %v545
    %748 = vmatpush1.msra.mxu0 %v544
    %749 = vmatprep.subr.mxu0 %v543
    %750 = vmatpush1.msra.mxu0 %v542
    %751 = vmatprep.subr.mxu0 %v541
    %752 = vmatpush1.msra.mxu0 %v540
    %753 = vmatprep.subr.mxu0 %v539
    %754 = vmatpush1.msra.mxu0 %v538
    %755 = vmatprep.subr.mxu0 %v537
    %756 = vmatpush1.msra.mxu0 %v536
    %757 = vmatprep.subr.mxu0 %v535
    %758 = vmatpush1.msra.mxu0 %v534
    %759 = vmatprep.subr.mxu0 %v533
    %760 = vmatpush1.msra.mxu0 %v532
    %761 = vmatprep.subr.mxu0 %v531
    %762 = vmatpush1.msra.mxu0 %v530
    %763 = vmatprep.subr.mxu0 %v529
    %764 = vmatpush1.msra.mxu0 %v528
    %765 = vmatprep.subr.mxu0 %v527
    %766 = vmatpush1.msra.mxu0 %v526
    %767 = vmatprep.subr.mxu0 %v525
    %768 = vmatpush1.msra.mxu0 %v524
    %769 = vmatprep.subr.mxu0 %v523
    %770 = vmatpush1.msra.mxu0 %v522
    %771 = vmatprep.subr.mxu0 %v585
    %772 = vmatpush2.msra.mxu0 %v584
    %773 = vmatprep.subr.mxu0 %v583
    %774 = vmatpush2.msra.mxu0 %v582
    %775 = vmatprep.subr.mxu0 %v581
    %776 = vmatpush2.msra.mxu0 %v580
    %777 = vmatprep.subr.mxu0 %v579
    %778 = vmatpush2.msra.mxu0 %v578
    %779 = vmatprep.subr.mxu0 %v577
    %780 = vmatpush2.msra.mxu0 %v576
    %781 = vmatprep.subr.mxu0 %v575
    %782 = vmatpush2.msra.mxu0 %v574
    %783 = vmatprep.subr.mxu0 %v573
    %784 = vmatpush2.msra.mxu0 %v572
    %785 = vmatprep.subr.mxu0 %v571
    %786 = vmatpush2.msra.mxu0 %v570
    %787 = vmatprep.subr.mxu0 %v569
    %788 = vmatpush2.msra.mxu0 %v568
    %789 = vmatprep.subr.mxu0 %v567
    %790 = vmatpush2.msra.mxu0 %v566
    %791 = vmatprep.subr.mxu0 %v565
    %792 = vmatpush2.msra.mxu0 %v564
    %793 = vmatprep.subr.mxu0 %v563
    %794 = vmatpush2.msra.mxu0 %v562
    %795 = vmatprep.subr.mxu0 %v561
    %796 = vmatpush2.msra.mxu0 %v560
    %797 = vmatprep.subr.mxu0 %v559
    %798 = vmatpush2.msra.mxu0 %v558
    %799 = vmatprep.subr.mxu0 %v557
    %800 = vmatpush2.msra.mxu0 %v556
    %801 = vmatprep.subr.mxu0 %v555
    %802 = vmatpush2.msra.mxu0 %v554
    %803 = vmatprep.mubr.f32.mxu0 %v449
    %804 = vmatmul.mubr.f32.gmra.mxu0 %v448
    %v805 = vpop.f32.mrf.mxu0
    %v806 = vadd.f32 %v729, %v805
    %v807 = vpop.f32.mrf.mxu0
    %v808 = vadd.f32 %v731, %v807
    %809 = vmatprep.mubr.f32.mxu0 %v455
    %810 = vmatmul.mubr.f32.gmra.mxu0 %v454
    %v811 = vpop.f32.mrf.mxu0
    %v812 = vadd.f32 %v735, %v811
    %v813 = vpop.f32.mrf.mxu0
    %v814 = vadd.f32 %v737, %v813
    %815 = vdwg.mxu0
    %816 = vmatprep.subr.mxu0 %v617
    %817 = vmatpush1.msra.mxu0 %v616
    %818 = vmatprep.subr.mxu0 %v615
    %819 = vmatpush1.msra.mxu0 %v614
    %820 = vmatprep.subr.mxu0 %v613
    %821 = vmatpush1.msra.mxu0 %v612
    %822 = vmatprep.subr.mxu0 %v611
    %823 = vmatpush1.msra.mxu0 %v610
    %824 = vmatprep.subr.mxu0 %v609
    %825 = vmatpush1.msra.mxu0 %v608
    %826 = vmatprep.subr.mxu0 %v607
    %827 = vmatpush1.msra.mxu0 %v606
    %828 = vmatprep.subr.mxu0 %v605
    %829 = vmatpush1.msra.mxu0 %v604
    %830 = vmatprep.subr.mxu0 %v603
    %831 = vmatpush1.msra.mxu0 %v602
    %832 = vmatprep.subr.mxu0 %v601
    %833 = vmatpush1.msra.mxu0 %v600
    %834 = vmatprep.subr.mxu0 %v599
    %835 = vmatpush1.msra.mxu0 %v598
    %836 = vmatprep.subr.mxu0 %v597
    %837 = vmatpush1.msra.mxu0 %v596
    %838 = vmatprep.subr.mxu0 %v595
    %839 = vmatpush1.msra.mxu0 %v594
    %840 = vmatprep.subr.mxu0 %v593
    %841 = vmatpush1.msra.mxu0 %v592
    %842 = vmatprep.subr.mxu0 %v591
    %843 = vmatpush1.msra.mxu0 %v590
    %844 = vmatprep.subr.mxu0 %v589
    %845 = vmatpush1.msra.mxu0 %v588
    %846 = vmatprep.subr.mxu0 %v587
    %847 = vmatpush1.msra.mxu0 %v586
    %848 = vmatprep.subr.mxu0 %v649
    %849 = vmatpush2.msra.mxu0 %v648
    %850 = vmatprep.subr.mxu0 %v647
    %851 = vmatpush2.msra.mxu0 %v646
    %852 = vmatprep.subr.mxu0 %v645
    %853 = vmatpush2.msra.mxu0 %v644
    %854 = vmatprep.subr.mxu0 %v643
    %855 = vmatpush2.msra.mxu0 %v642
    %856 = vmatprep.subr.mxu0 %v641
    %857 = vmatpush2.msra.mxu0 %v640
    %858 = vmatprep.subr.mxu0 %v639
    %859 = vmatpush2.msra.mxu0 %v638
    %860 = vmatprep.subr.mxu0 %v637
    %861 = vmatpush2.msra.mxu0 %v636
    %862 = vmatprep.subr.mxu0 %v635
    %863 = vmatpush2.msra.mxu0 %v634
    %864 = vmatprep.subr.mxu0 %v633
    %865 = vmatpush2.msra.mxu0 %v632
    %866 = vmatprep.subr.mxu0 %v631
    %867 = vmatpush2.msra.mxu0 %v630
    %868 = vmatprep.subr.mxu0 %v629
    %869 = vmatpush2.msra.mxu0 %v628
    %870 = vmatprep.subr.mxu0 %v627
    %871 = vmatpush2.msra.mxu0 %v626
    %872 = vmatprep.subr.mxu0 %v625
    %873 = vmatpush2.msra.mxu0 %v624
    %874 = vmatprep.subr.mxu0 %v623
    %875 = vmatpush2.msra.mxu0 %v622
    %876 = vmatprep.subr.mxu0 %v621
    %877 = vmatpush2.msra.mxu0 %v620
    %878 = vmatprep.subr.mxu0 %v619
    %879 = vmatpush2.msra.mxu0 %v618
    %880 = vmatprep.mubr.f32.mxu0 %v451
    %881 = vmatmul.mubr.f32.gmra.mxu0 %v450
    %v882 = vpop.f32.mrf.mxu0
    %v883 = vadd.f32 %v806, %v882
    %v884 = vpop.f32.mrf.mxu0
    %v885 = vadd.f32 %v808, %v884
    %886 = vmatprep.mubr.f32.mxu0 %v457
    %887 = vmatmul.mubr.f32.gmra.mxu0 %v456
    %v888 = vpop.f32.mrf.mxu0
    %v889 = vadd.f32 %v812, %v888
    %v890 = vpop.f32.mrf.mxu0
    %v891 = vadd.f32 %v814, %v890
    %892 = vdwg.mxu0
    %893 = vst [vmem:[#allocation11] sm:$0xff] %v883
    %894 = vst [vmem:[#allocation11 + $0x8] sm:$0xff] %v885
    %895 = vst [vmem:[#allocation11 + $0x10] sm:$0xff] %v889
    %896 = vst [vmem:[#allocation11 + $0x18] sm:$0xff] %v891
    // Predicated region
    $region42: #{tpu_custom_call.1} parent=1 // pred_check
      _
    $region43: #{tpu_custom_call.1} parent=1 // pred_check_branch
      %898 = sbr.rel (0) target = $region45
    $region44: #{tpu_custom_call.1} parent=1 // pred_region
      %s900 = ssub.s32 512, 512
      %901 = vsyncadd [#allocation5], %s900
      %s902 = sshll.u32 [#allocation11], 4
      %s903 = int_to_ptr.vmem [resolvable:$true] %s902
      %908 = dma.vmem_to_hbm [thread:$0]  %s903, 512, %s5, [#allocation5], 256, 256, 16
    $region45: #{tpu_custom_call.1} parent=1 // pred_fallthru
      _
    // Predicated region
    $region46: #{tpu_custom_call.1} parent=1 // pred_check
      _
    $region47: #{tpu_custom_call.1} parent=1 // pred_check_branch
      %910 = sbr.rel (0) target = $region49
    $region48: #{tpu_custom_call.1} parent=1 // pred_region
      %911 = dma.done [#allocation5], 512
    $region49: #{tpu_custom_call.1} parent=1 // pred_fallthru
      _
    %912 = vsyncpa [#allocation4], 1
    %913 = vsyncpa [#allocation7], 1
    %914 = vsyncpa [#allocation10], 1
    %915 = vsyncpa [#allocation5], 1

</llo_original>
